<compile_context>
chip_gen: v5e
topology: v5e:2x2
jax: 0.10.0
libtpu: 0.0.40
codegen_flags: <defaults>
</compile_context>

<pallas_src>
import functools

import jax
import jax.numpy as jnp
from jax import lax
from jax.experimental import pallas as pl
from jax.experimental.pallas import tpu as pltpu

_LANE = 128
_SUBLANE = 8
_NEG = -1e30


def _round_up(v, m):
    return ((v + m - 1) // m) * m


def _full_spec(shape):
    # Single-block (full-array) BlockSpec; grid is (1,).
    return pl.BlockSpec(shape, lambda i: (0,) * len(shape))


# ----------------------------------------------------------------------------
# Fused forward kernel: 6 GCN layers + pooling + encoder + decoder
# ----------------------------------------------------------------------------
def _fused_forward_kernel(
    a_ref,       # [N, N]       normalized dense adjacency  D^-1/2 (A+I) D^-1/2
    x_ref,       # [N, F_in]    node features (unpadded feature width)
    w_ref,       # [6, Fm, Fm]  stacked conv weights (zero-padded to Fm x Fm)
    b_ref,       # [6, 1, Fm]   stacked conv biases (zero-padded)
    mmax_ref,    # [Bp, N, 1]   additive max-pool mask (0 = member, -1e30 otherwise)
    mmean_ref,   # [Bp, N]      mean-pool matrix (1/count for members, 0 otherwise)
    we_ref,      # [2, Fm, L]   encoder weight split: [0] acts on max pool, [1] on mean
    be_ref,      # [1, L]       encoder bias
    wd_ref,      # [L, Pp]      decoder weight, lane-padded to a multiple of 128
    bd_ref,      # [1, Pp]      decoder bias, lane-padded
    o_ref,       # [Bp, Pp]     lane/sublane-dense output block
    *, f_in,
):
    a = a_ref[...]                                            # hoisted, reused by all layers

    def conv(h, w, b, relu):
        xw = jnp.dot(h, w, preferred_element_type=jnp.float32)
        out = jnp.dot(a, xw, preferred_element_type=jnp.float32) + b
        return jnp.maximum(out, 0.0) if relu else out

    # conv1: real input width f_in (rows >= f_in of the stacked weight are zero pad)
    h = conv(x_ref[...], w_ref[0][:f_in, :], b_ref[0], True)
    # conv2..conv5 (ReLU after each) as an unrolled fori: keeps live ranges bounded
    # if Fm / N are ever scaled up, neutral at this size.
    h = lax.fori_loop(
        1, 5, lambda i, hh: conv(hh, w_ref[i], b_ref[i], True), h, unroll=True)
    # conv6 -- no ReLU before pooling (matches the reference ordering)
    h = conv(h, w_ref[5], b_ref[5], False)                    # [N, Fm]

    # ---- batched pooling (no per-graph loop) ----
    # mean pool for all graphs in one MXU matmul
    pmean = jnp.dot(mmean_ref[...], h, preferred_element_type=jnp.float32)   # [Bp, Fm]
    # max pool: additive -1e30 mask broadcast over features, reduce over node axis
    pmax = jnp.max(mmax_ref[...] + h[None, :, :], axis=1)                    # [Bp, Fm]
    # ReLU applied after the (implicit) [max | mean] concat
    pmax = jnp.maximum(pmax, 0.0)
    pmean = jnp.maximum(pmean, 0.0)

    # ---- encoder (split weight removes the concat) + decoder, fully batched ----
    z = (jnp.dot(pmax, we_ref[0], preferred_element_type=jnp.float32)
         + jnp.dot(pmean, we_ref[1], preferred_element_type=jnp.float32)
         + be_ref[...])                                                       # [Bp, L]
    o_ref[...] = (jnp.dot(z, wd_ref[...], preferred_element_type=jnp.float32)
                  + bd_ref[...])                                              # [Bp, Pp]


# ----------------------------------------------------------------------------
# One-time glue (static graph): dense normalized adjacency + pooling masks.
# Kept OUT of the per-step forward path per the perf review.
# ----------------------------------------------------------------------------
def precompute_graph(edge_index, batch_index, batch_size, num_total_nodes):
    n = num_total_nodes
    src, dst = edge_index[0], edge_index[1]
    # Message flows src -> dst.  Note: duplicate edges collapse to weight 1
    # (edge_index is assumed coalesced, as in the test graph).
    a = jnp.zeros((n, n), jnp.float32).at[dst, src].set(1.0)
    a = a + jnp.eye(n, dtype=jnp.float32)                     # self-loops
    deg = jnp.sum(a, axis=1)
    dinv = jax.lax.rsqrt(deg)
    a_hat = dinv[:, None] * a * dinv[None, :]

    b_pad = _round_up(max(batch_size, _SUBLANE), _SUBLANE)
    graph_ids = jnp.arange(b_pad, dtype=batch_index.dtype)
    member = graph_ids[:, None] == batch_index[None, :]                       # [Bp, N]
    m_max_add = jnp.where(member, 0.0, _NEG).astype(jnp.float32)[:, :, None]  # [Bp, N, 1]
    counts = jnp.maximum(jnp.sum(member.astype(jnp.float32), axis=1, keepdims=True), 1.0)
    m_mean = member.astype(jnp.float32) / counts                              # [Bp, N]
    return {"a_hat": a_hat, "m_max_add": m_max_add, "m_mean": m_mean,
            "batch_size": batch_size}


# ----------------------------------------------------------------------------
# One-time parameter packing (21 tensors -> 6 dense blobs => fewer, denser DMAs)
# ----------------------------------------------------------------------------
def pack_params(params, num_features, embedding_sequence, latent_space_dim):
    fm = max([num_features] + list(embedding_sequence))
    w_stack, b_stack = [], []
    for i in range(6):
        w, b = params[f"conv{i + 1}"]
        w_stack.append(jnp.pad(w, ((0, fm - w.shape[0]), (0, fm - w.shape[1]))))
        b_stack.append(jnp.pad(b, ((0, fm - b.shape[0]),)).reshape(1, fm))
    w_stack = jnp.stack(w_stack)                               # [6, Fm, Fm]
    b_stack = jnp.stack(b_stack)                               # [6, 1, Fm]

    # TODO(synk): Encoder/Decoder class bodies are not in the provided source;
    # assumed a single nn.Linear each (self.output_act Sigmoid is unused in forward).
    we, be = params["encoder"]
    f6 = embedding_sequence[5]
    # torch.cat([gmp, gap]) -> encoder rows [:f6] act on max pool, [f6:] on mean pool.
    we_max = jnp.pad(we[:f6], ((0, fm - f6), (0, 0)))
    we_mean = jnp.pad(we[f6:], ((0, fm - f6), (0, 0)))
    we_stack = jnp.stack([we_max, we_mean])                    # [2, Fm, L]
    be2 = be.reshape(1, -1)                                    # [1, L]

    wd, bd = params["decoder"]
    n_out = wd.shape[1]
    p_pad = _round_up(n_out, _LANE)
    wd_pad = jnp.pad(wd, ((0, 0), (0, p_pad - n_out)))         # [L, Pp]
    bd_pad = jnp.pad(bd, ((0, p_pad - n_out),)).reshape(1, p_pad)

    return {"w_stack": w_stack, "b_stack": b_stack, "we_stack": we_stack,
            "be": be2, "wd": wd_pad, "bd": bd_pad, "n_out": n_out}


# ----------------------------------------------------------------------------
# Per-step forward: a single fused pallas_call plus one strip-slice.
# ----------------------------------------------------------------------------
def model4_variant4_forward(packed, graph, x):
    f_in = x.shape[1]
    b_pad = graph["m_mean"].shape[0]
    p_pad = packed["wd"].shape[1]

    args = (graph["a_hat"], x,
            packed["w_stack"], packed["b_stack"],
            graph["m_max_add"], graph["m_mean"],
            packed["we_stack"], packed["be"], packed["wd"], packed["bd"])

    out = pl.pallas_call(
        functools.partial(_fused_forward_kernel, f_in=f_in),
        grid=(1,),
        out_shape=jax.ShapeDtypeStruct((b_pad, p_pad), jnp.float32),
        in_specs=[_full_spec(arr.shape) for arr in args],
        out_specs=_full_spec((b_pad, p_pad)),
        compiler_params=pltpu.CompilerParams(
            dimension_semantics=("arbitrary",),
            vmem_limit_bytes=16 * 1024 * 1024,   # footprint is a few hundred KiB
        ),
    )(*args)
    return out[:graph["batch_size"], :packed["n_out"]]


# ----------------------------------------------------------------------------
# Deterministic parameter initialization (synthetic, not a checkpoint load)
# ----------------------------------------------------------------------------
def init_params(key, num_nodes, num_features, embedding_sequence, latent_space_dim):
    params = {}
    dims = [num_features] + list(embedding_sequence)
    keys = jax.random.split(key, 8)
    for i in range(6):
        fin, fout = dims[i], dims[i + 1]
        w = jax.random.normal(keys[i], (fin, fout), jnp.float32) / jnp.sqrt(jnp.float32(fin))
        params[f"conv{i + 1}"] = (w, jnp.zeros((fout,), jnp.float32))
    enc_in = 2 * embedding_sequence[5]
    params["encoder"] = (
        jax.random.normal(keys[6], (enc_in, latent_space_dim), jnp.float32)
        / jnp.sqrt(jnp.float32(enc_in)),
        jnp.zeros((latent_space_dim,), jnp.float32),
    )
    params["decoder"] = (
        jax.random.normal(keys[7], (latent_space_dim, num_nodes), jnp.float32)
        / jnp.sqrt(jnp.float32(latent_space_dim)),
        jnp.zeros((num_nodes,), jnp.float32),
    )
    return params


if __name__ == "__main__":
    key = jax.random.PRNGKey(0)

    # small shapes consistent with the module
    num_nodes = 8                 # nodes per graph (decoder output dim = num_nodes * 1)
    num_features = 8
    embedding_sequence = [32, 32, 32, 32, 32, 32]
    latent_space_dim = 8
    batch_size = 2
    total_nodes = batch_size * num_nodes    # 16 nodes total in the batched graph

    # batch index: first 8 nodes -> graph 0, next 8 -> graph 1
    batch_index = jnp.array([0] * num_nodes + [1] * num_nodes, dtype=jnp.int32)

    # undirected ring edges inside each graph
    src, dst = [], []
    for g in range(batch_size):
        base = g * num_nodes
        for i in range(num_nodes):
            u, v = base + i, base + (i + 1) % num_nodes
            src += [u, v]
            dst += [v, u]
    edge_index = jnp.array([src, dst], dtype=jnp.int32)

    kp, kx = jax.random.split(key)
    x = jax.random.normal(kx, (total_nodes, num_features), jnp.float32)
    params = init_params(kp, num_nodes, num_features, embedding_sequence, latent_space_dim)

    # ---- one-time precompute / packing (out of the per-step hot path) ----
    graph = precompute_graph(edge_index, batch_index, batch_size, total_nodes)
    packed = pack_params(params, num_features, embedding_sequence, latent_space_dim)

    # ---- per-step forward: one fused pallas_call ----
    out = model4_variant4_forward(packed, graph, x)
    jax.block_until_ready(out)
    assert out.shape == (batch_size, num_nodes)
    assert out.dtype == jnp.float32
    print("KERNEL_OK")
</pallas_src>

<mosaic_0001>
module attributes {stable_mosaic.version = 11 : i64} {
  func.func @_fused_forward_kernel(%arg0: i32, %arg1: memref<16x16xf32, #tpu.memory_space<vmem>>, %arg2: memref<16x8xf32, #tpu.memory_space<vmem>>, %arg3: memref<6x32x32xf32, #tpu.memory_space<vmem>>, %arg4: memref<6x1x32xf32, #tpu.memory_space<vmem>>, %arg5: memref<8x16x1xf32, #tpu.memory_space<vmem>>, %arg6: memref<8x16xf32, #tpu.memory_space<vmem>>, %arg7: memref<2x32x8xf32, #tpu.memory_space<vmem>>, %arg8: memref<1x8xf32, #tpu.memory_space<vmem>>, %arg9: memref<8x128xf32, #tpu.memory_space<vmem>>, %arg10: memref<1x128xf32, #tpu.memory_space<vmem>>, %arg11: memref<8x128xf32, #tpu.memory_space<vmem>>) attributes {dimension_semantics = [#tpu.dimension_semantics<arbitrary>], iteration_bounds = array<i64: 1>, scalar_prefetch = 0 : i64, scratch_operands = 0 : i64, tpu.core_type = #tpu.core_type<tc>, window_params = [{pipeline_mode = #tpu.pipeline_mode<synchronous>, transform_indices = @transform_0, window_bounds = array<i64: 16, 16>}, {pipeline_mode = #tpu.pipeline_mode<synchronous>, transform_indices = @transform_1, window_bounds = array<i64: 16, 8>}, {pipeline_mode = #tpu.pipeline_mode<synchronous>, transform_indices = @transform_2, window_bounds = array<i64: 6, 32, 32>}, {pipeline_mode = #tpu.pipeline_mode<synchronous>, transform_indices = @transform_3, window_bounds = array<i64: 6, 1, 32>}, {pipeline_mode = #tpu.pipeline_mode<synchronous>, transform_indices = @transform_4, window_bounds = array<i64: 8, 16, 1>}, {pipeline_mode = #tpu.pipeline_mode<synchronous>, transform_indices = @transform_5, window_bounds = array<i64: 8, 16>}, {pipeline_mode = #tpu.pipeline_mode<synchronous>, transform_indices = @transform_6, window_bounds = array<i64: 2, 32, 8>}, {pipeline_mode = #tpu.pipeline_mode<synchronous>, transform_indices = @transform_7, window_bounds = array<i64: 1, 8>}, {pipeline_mode = #tpu.pipeline_mode<synchronous>, transform_indices = @transform_8, window_bounds = array<i64: 8, 128>}, {pipeline_mode = #tpu.pipeline_mode<synchronous>, transform_indices = @transform_9, window_bounds = array<i64: 1, 128>}, {pipeline_mode = #tpu.pipeline_mode<synchronous>, transform_indices = @transform_10, window_bounds = array<i64: 8, 128>}]} {
    %c0 = arith.constant 0 : index
    %c0_0 = arith.constant 0 : index
    %0 = vector.load %arg1[%c0, %c0_0] : memref<16x16xf32, #tpu.memory_space<vmem>>, vector<16x16xf32>
    %c0_1 = arith.constant 0 : index
    %c0_2 = arith.constant 0 : index
    %1 = vector.load %arg2[%c0_1, %c0_2] : memref<16x8xf32, #tpu.memory_space<vmem>>, vector<16x8xf32>
    %c0_3 = arith.constant 0 : index
    %c0_4 = arith.constant 0 : index
    %c0_5 = arith.constant 0 : index
    %2 = vector.load %arg3[%c0_3, %c0_4, %c0_5] : memref<6x32x32xf32, #tpu.memory_space<vmem>>, vector<1x32x32xf32>
    %3 = vector.shape_cast %2 : vector<1x32x32xf32> to vector<32x32xf32>
    %4 = vector.extract_strided_slice %3 {offsets = [0, 0], sizes = [8, 32], strides = [1, 1]} : vector<32x32xf32> to vector<8x32xf32>
    %c0_6 = arith.constant 0 : index
    %c0_7 = arith.constant 0 : index
    %c0_8 = arith.constant 0 : index
    %5 = vector.load %arg4[%c0_6, %c0_7, %c0_8] : memref<6x1x32xf32, #tpu.memory_space<vmem>>, vector<1x1x32xf32>
    %6 = vector.shape_cast %5 : vector<1x1x32xf32> to vector<1x32xf32>
    %cst = arith.constant dense<0.000000e+00> : vector<16x32xf32>
    %7 = tpu.matmul %1, %4, %cst {dimension_numbers = #tpu.dot_dimension_numbers<[1], [0], [0], [1], [0, 0, 1, 1], [], []>} : vector<16x8xf32>, vector<8x32xf32>, vector<16x32xf32> -> vector<16x32xf32>
    %cst_9 = arith.constant dense<0.000000e+00> : vector<16x32xf32>
    %8 = tpu.matmul %0, %7, %cst_9 {dimension_numbers = #tpu.dot_dimension_numbers<[1], [0], [0], [1], [0, 0, 1, 1], [], []>} : vector<16x16xf32>, vector<16x32xf32>, vector<16x32xf32> -> vector<16x32xf32>
    %9 = vector.broadcast %6 : vector<1x32xf32> to vector<16x32xf32>
    %10 = arith.addf %8, %9 : vector<16x32xf32>
    %cst_10 = arith.constant 0.000000e+00 : f32
    %11 = vector.broadcast %cst_10 : f32 to vector<16x32xf32>
    %12 = arith.maximumf %10, %11 : vector<16x32xf32>
    %c1_i32 = arith.constant 1 : i32
    %13 = arith.index_cast %c1_i32 : i32 to index
    %c0_11 = arith.constant 0 : index
    %c0_12 = arith.constant 0 : index
    %14 = vector.load %arg3[%13, %c0_11, %c0_12] : memref<6x32x32xf32, #tpu.memory_space<vmem>>, vector<1x32x32xf32>
    %15 = vector.shape_cast %14 : vector<1x32x32xf32> to vector<32x32xf32>
    %16 = arith.index_cast %c1_i32 : i32 to index
    %c0_13 = arith.constant 0 : index
    %c0_14 = arith.constant 0 : index
    %17 = vector.load %arg4[%16, %c0_13, %c0_14] : memref<6x1x32xf32, #tpu.memory_space<vmem>>, vector<1x1x32xf32>
    %18 = vector.shape_cast %17 : vector<1x1x32xf32> to vector<1x32xf32>
    %cst_15 = arith.constant dense<0.000000e+00> : vector<16x32xf32>
    %19 = tpu.matmul %12, %15, %cst_15 {dimension_numbers = #tpu.dot_dimension_numbers<[1], [0], [0], [1], [0, 0, 1, 1], [], []>} : vector<16x32xf32>, vector<32x32xf32>, vector<16x32xf32> -> vector<16x32xf32>
    %cst_16 = arith.constant dense<0.000000e+00> : vector<16x32xf32>
    %20 = tpu.matmul %0, %19, %cst_16 {dimension_numbers = #tpu.dot_dimension_numbers<[1], [0], [0], [1], [0, 0, 1, 1], [], []>} : vector<16x16xf32>, vector<16x32xf32>, vector<16x32xf32> -> vector<16x32xf32>
    %21 = vector.broadcast %18 : vector<1x32xf32> to vector<16x32xf32>
    %22 = arith.addf %20, %21 : vector<16x32xf32>
    %cst_17 = arith.constant 0.000000e+00 : f32
    %23 = vector.broadcast %cst_17 : f32 to vector<16x32xf32>
    %24 = arith.maximumf %22, %23 : vector<16x32xf32>
    %c2_i32 = arith.constant 2 : i32
    %25 = arith.index_cast %c2_i32 : i32 to index
    %c0_18 = arith.constant 0 : index
    %c0_19 = arith.constant 0 : index
    %26 = vector.load %arg3[%25, %c0_18, %c0_19] : memref<6x32x32xf32, #tpu.memory_space<vmem>>, vector<1x32x32xf32>
    %27 = vector.shape_cast %26 : vector<1x32x32xf32> to vector<32x32xf32>
    %28 = arith.index_cast %c2_i32 : i32 to index
    %c0_20 = arith.constant 0 : index
    %c0_21 = arith.constant 0 : index
    %29 = vector.load %arg4[%28, %c0_20, %c0_21] : memref<6x1x32xf32, #tpu.memory_space<vmem>>, vector<1x1x32xf32>
    %30 = vector.shape_cast %29 : vector<1x1x32xf32> to vector<1x32xf32>
    %cst_22 = arith.constant dense<0.000000e+00> : vector<16x32xf32>
    %31 = tpu.matmul %24, %27, %cst_22 {dimension_numbers = #tpu.dot_dimension_numbers<[1], [0], [0], [1], [0, 0, 1, 1], [], []>} : vector<16x32xf32>, vector<32x32xf32>, vector<16x32xf32> -> vector<16x32xf32>
    %cst_23 = arith.constant dense<0.000000e+00> : vector<16x32xf32>
    %32 = tpu.matmul %0, %31, %cst_23 {dimension_numbers = #tpu.dot_dimension_numbers<[1], [0], [0], [1], [0, 0, 1, 1], [], []>} : vector<16x16xf32>, vector<16x32xf32>, vector<16x32xf32> -> vector<16x32xf32>
    %33 = vector.broadcast %30 : vector<1x32xf32> to vector<16x32xf32>
    %34 = arith.addf %32, %33 : vector<16x32xf32>
    %cst_24 = arith.constant 0.000000e+00 : f32
    %35 = vector.broadcast %cst_24 : f32 to vector<16x32xf32>
    %36 = arith.maximumf %34, %35 : vector<16x32xf32>
    %c3_i32 = arith.constant 3 : i32
    %37 = arith.index_cast %c3_i32 : i32 to index
    %c0_25 = arith.constant 0 : index
    %c0_26 = arith.constant 0 : index
    %38 = vector.load %arg3[%37, %c0_25, %c0_26] : memref<6x32x32xf32, #tpu.memory_space<vmem>>, vector<1x32x32xf32>
    %39 = vector.shape_cast %38 : vector<1x32x32xf32> to vector<32x32xf32>
    %40 = arith.index_cast %c3_i32 : i32 to index
    %c0_27 = arith.constant 0 : index
    %c0_28 = arith.constant 0 : index
    %41 = vector.load %arg4[%40, %c0_27, %c0_28] : memref<6x1x32xf32, #tpu.memory_space<vmem>>, vector<1x1x32xf32>
    %42 = vector.shape_cast %41 : vector<1x1x32xf32> to vector<1x32xf32>
    %cst_29 = arith.constant dense<0.000000e+00> : vector<16x32xf32>
    %43 = tpu.matmul %36, %39, %cst_29 {dimension_numbers = #tpu.dot_dimension_numbers<[1], [0], [0], [1], [0, 0, 1, 1], [], []>} : vector<16x32xf32>, vector<32x32xf32>, vector<16x32xf32> -> vector<16x32xf32>
    %cst_30 = arith.constant dense<0.000000e+00> : vector<16x32xf32>
    %44 = tpu.matmul %0, %43, %cst_30 {dimension_numbers = #tpu.dot_dimension_numbers<[1], [0], [0], [1], [0, 0, 1, 1], [], []>} : vector<16x16xf32>, vector<16x32xf32>, vector<16x32xf32> -> vector<16x32xf32>
    %45 = vector.broadcast %42 : vector<1x32xf32> to vector<16x32xf32>
    %46 = arith.addf %44, %45 : vector<16x32xf32>
    %cst_31 = arith.constant 0.000000e+00 : f32
    %47 = vector.broadcast %cst_31 : f32 to vector<16x32xf32>
    %48 = arith.maximumf %46, %47 : vector<16x32xf32>
    %c4_i32 = arith.constant 4 : i32
    %49 = arith.index_cast %c4_i32 : i32 to index
    %c0_32 = arith.constant 0 : index
    %c0_33 = arith.constant 0 : index
    %50 = vector.load %arg3[%49, %c0_32, %c0_33] : memref<6x32x32xf32, #tpu.memory_space<vmem>>, vector<1x32x32xf32>
    %51 = vector.shape_cast %50 : vector<1x32x32xf32> to vector<32x32xf32>
    %52 = arith.index_cast %c4_i32 : i32 to index
    %c0_34 = arith.constant 0 : index
    %c0_35 = arith.constant 0 : index
    %53 = vector.load %arg4[%52, %c0_34, %c0_35] : memref<6x1x32xf32, #tpu.memory_space<vmem>>, vector<1x1x32xf32>
    %54 = vector.shape_cast %53 : vector<1x1x32xf32> to vector<1x32xf32>
    %cst_36 = arith.constant dense<0.000000e+00> : vector<16x32xf32>
    %55 = tpu.matmul %48, %51, %cst_36 {dimension_numbers = #tpu.dot_dimension_numbers<[1], [0], [0], [1], [0, 0, 1, 1], [], []>} : vector<16x32xf32>, vector<32x32xf32>, vector<16x32xf32> -> vector<16x32xf32>
    %cst_37 = arith.constant dense<0.000000e+00> : vector<16x32xf32>
    %56 = tpu.matmul %0, %55, %cst_37 {dimension_numbers = #tpu.dot_dimension_numbers<[1], [0], [0], [1], [0, 0, 1, 1], [], []>} : vector<16x16xf32>, vector<16x32xf32>, vector<16x32xf32> -> vector<16x32xf32>
    %57 = vector.broadcast %54 : vector<1x32xf32> to vector<16x32xf32>
    %58 = arith.addf %56, %57 : vector<16x32xf32>
    %cst_38 = arith.constant 0.000000e+00 : f32
    %59 = vector.broadcast %cst_38 : f32 to vector<16x32xf32>
    %60 = arith.maximumf %58, %59 : vector<16x32xf32>
    %c4_i32_39 = arith.constant 4 : i32
    %c5 = arith.constant 5 : index
    %c0_40 = arith.constant 0 : index
    %c0_41 = arith.constant 0 : index
    %61 = vector.load %arg3[%c5, %c0_40, %c0_41] : memref<6x32x32xf32, #tpu.memory_space<vmem>>, vector<1x32x32xf32>
    %62 = vector.shape_cast %61 : vector<1x32x32xf32> to vector<32x32xf32>
    %c5_42 = arith.constant 5 : index
    %c0_43 = arith.constant 0 : index
    %c0_44 = arith.constant 0 : index
    %63 = vector.load %arg4[%c5_42, %c0_43, %c0_44] : memref<6x1x32xf32, #tpu.memory_space<vmem>>, vector<1x1x32xf32>
    %64 = vector.shape_cast %63 : vector<1x1x32xf32> to vector<1x32xf32>
    %cst_45 = arith.constant dense<0.000000e+00> : vector<16x32xf32>
    %65 = tpu.matmul %60, %62, %cst_45 {dimension_numbers = #tpu.dot_dimension_numbers<[1], [0], [0], [1], [0, 0, 1, 1], [], []>} : vector<16x32xf32>, vector<32x32xf32>, vector<16x32xf32> -> vector<16x32xf32>
    %cst_46 = arith.constant dense<0.000000e+00> : vector<16x32xf32>
    %66 = tpu.matmul %0, %65, %cst_46 {dimension_numbers = #tpu.dot_dimension_numbers<[1], [0], [0], [1], [0, 0, 1, 1], [], []>} : vector<16x16xf32>, vector<16x32xf32>, vector<16x32xf32> -> vector<16x32xf32>
    %67 = vector.broadcast %64 : vector<1x32xf32> to vector<16x32xf32>
    %68 = arith.addf %66, %67 : vector<16x32xf32>
    %c0_47 = arith.constant 0 : index
    %c0_48 = arith.constant 0 : index
    %69 = vector.load %arg6[%c0_47, %c0_48] : memref<8x16xf32, #tpu.memory_space<vmem>>, vector<8x16xf32>
    %cst_49 = arith.constant dense<0.000000e+00> : vector<8x32xf32>
    %70 = tpu.matmul %69, %68, %cst_49 {dimension_numbers = #tpu.dot_dimension_numbers<[1], [0], [0], [1], [0, 0, 1, 1], [], []>} : vector<8x16xf32>, vector<16x32xf32>, vector<8x32xf32> -> vector<8x32xf32>
    %c0_50 = arith.constant 0 : index
    %c0_51 = arith.constant 0 : index
    %c0_52 = arith.constant 0 : index
    %71 = vector.load %arg5[%c0_50, %c0_51, %c0_52] : memref<8x16x1xf32, #tpu.memory_space<vmem>>, vector<8x16x1xf32>
    %72 = vector.shape_cast %68 : vector<16x32xf32> to vector<1x16x32xf32>
    %73 = vector.broadcast %71 : vector<8x16x1xf32> to vector<8x16x32xf32>
    %74 = vector.broadcast %72 : vector<1x16x32xf32> to vector<8x16x32xf32>
    %75 = arith.addf %73, %74 : vector<8x16x32xf32>
    %cst_53 = arith.constant dense<0xFF800000> : vector<8x32xf32>
    %76 = vector.multi_reduction <maximumf>, %75, %cst_53 [1] : vector<8x16x32xf32> to vector<8x32xf32>
    %cst_54 = arith.constant 0.000000e+00 : f32
    %77 = vector.broadcast %cst_54 : f32 to vector<8x32xf32>
    %78 = arith.maximumf %76, %77 : vector<8x32xf32>
    %cst_55 = arith.constant 0.000000e+00 : f32
    %79 = vector.broadcast %cst_55 : f32 to vector<8x32xf32>
    %80 = arith.maximumf %70, %79 : vector<8x32xf32>
    %c0_56 = arith.constant 0 : index
    %c0_57 = arith.constant 0 : index
    %c0_58 = arith.constant 0 : index
    %81 = vector.load %arg7[%c0_56, %c0_57, %c0_58] : memref<2x32x8xf32, #tpu.memory_space<vmem>>, vector<1x32x8xf32>
    %82 = vector.shape_cast %81 : vector<1x32x8xf32> to vector<32x8xf32>
    %cst_59 = arith.constant dense<0.000000e+00> : vector<8x8xf32>
    %83 = tpu.matmul %78, %82, %cst_59 {dimension_numbers = #tpu.dot_dimension_numbers<[1], [0], [0], [1], [0, 0, 1, 1], [], []>} : vector<8x32xf32>, vector<32x8xf32>, vector<8x8xf32> -> vector<8x8xf32>
    %c1 = arith.constant 1 : index
    %c0_60 = arith.constant 0 : index
    %c0_61 = arith.constant 0 : index
    %84 = vector.load %arg7[%c1, %c0_60, %c0_61] : memref<2x32x8xf32, #tpu.memory_space<vmem>>, vector<1x32x8xf32>
    %85 = vector.shape_cast %84 : vector<1x32x8xf32> to vector<32x8xf32>
    %cst_62 = arith.constant dense<0.000000e+00> : vector<8x8xf32>
    %86 = tpu.matmul %80, %85, %cst_62 {dimension_numbers = #tpu.dot_dimension_numbers<[1], [0], [0], [1], [0, 0, 1, 1], [], []>} : vector<8x32xf32>, vector<32x8xf32>, vector<8x8xf32> -> vector<8x8xf32>
    %87 = arith.addf %83, %86 : vector<8x8xf32>
    %c0_63 = arith.constant 0 : index
    %c0_64 = arith.constant 0 : index
    %88 = vector.load %arg8[%c0_63, %c0_64] : memref<1x8xf32, #tpu.memory_space<vmem>>, vector<1x8xf32>
    %89 = vector.broadcast %88 : vector<1x8xf32> to vector<8x8xf32>
    %90 = arith.addf %87, %89 : vector<8x8xf32>
    %c0_65 = arith.constant 0 : index
    %c0_66 = arith.constant 0 : index
    %91 = vector.load %arg9[%c0_65, %c0_66] : memref<8x128xf32, #tpu.memory_space<vmem>>, vector<8x128xf32>
    %cst_67 = arith.constant dense<0.000000e+00> : vector<8x128xf32>
    %92 = tpu.matmul %90, %91, %cst_67 {dimension_numbers = #tpu.dot_dimension_numbers<[1], [0], [0], [1], [0, 0, 1, 1], [], []>} : vector<8x8xf32>, vector<8x128xf32>, vector<8x128xf32> -> vector<8x128xf32>
    %c0_68 = arith.constant 0 : index
    %c0_69 = arith.constant 0 : index
    %93 = vector.load %arg10[%c0_68, %c0_69] : memref<1x128xf32, #tpu.memory_space<vmem>>, vector<1x128xf32>
    %94 = vector.broadcast %93 : vector<1x128xf32> to vector<8x128xf32>
    %95 = arith.addf %92, %94 : vector<8x128xf32>
    %c0_70 = arith.constant 0 : index
    %c0_71 = arith.constant 0 : index
    %96 = vector.load %arg11[%c0_70, %c0_71] : memref<8x128xf32, #tpu.memory_space<vmem>>, vector<8x128xf32>
    tpu.vector_store %arg11[%c0_70, %c0_71], %95 {strides = array<i32>} : memref<8x128xf32, #tpu.memory_space<vmem>>, vector<8x128xf32>,
    return
  }
  func.func @transform_0(%arg0: i32) -> (i32, i32) {
    %c0_i32 = arith.constant 0 : i32
    %c0_i32_0 = arith.constant 0 : i32
    %c0_i32_1 = arith.constant 0 : i32
    return %c0_i32, %c0_i32_0 : i32, i32
  }
  func.func @transform_1(%arg0: i32) -> (i32, i32) {
    %c0_i32 = arith.constant 0 : i32
    %c0_i32_0 = arith.constant 0 : i32
    %c0_i32_1 = arith.constant 0 : i32
    return %c0_i32, %c0_i32_0 : i32, i32
  }
  func.func @transform_2(%arg0: i32) -> (i32, i32, i32) {
    %c0_i32 = arith.constant 0 : i32
    %c0_i32_0 = arith.constant 0 : i32
    %c0_i32_1 = arith.constant 0 : i32
    %c0_i32_2 = arith.constant 0 : i32
    return %c0_i32, %c0_i32_0, %c0_i32_1 : i32, i32, i32
  }
  func.func @transform_3(%arg0: i32) -> (i32, i32, i32) {
    %c0_i32 = arith.constant 0 : i32
    %c0_i32_0 = arith.constant 0 : i32
    %c0_i32_1 = arith.constant 0 : i32
    %c0_i32_2 = arith.constant 0 : i32
    return %c0_i32, %c0_i32_0, %c0_i32_1 : i32, i32, i32
  }
  func.func @transform_4(%arg0: i32) -> (i32, i32, i32) {
    %c0_i32 = arith.constant 0 : i32
    %c0_i32_0 = arith.constant 0 : i32
    %c0_i32_1 = arith.constant 0 : i32
    %c0_i32_2 = arith.constant 0 : i32
    return %c0_i32, %c0_i32_0, %c0_i32_1 : i32, i32, i32
  }
  func.func @transform_5(%arg0: i32) -> (i32, i32) {
    %c0_i32 = arith.constant 0 : i32
    %c0_i32_0 = arith.constant 0 : i32
    %c0_i32_1 = arith.constant 0 : i32
    return %c0_i32, %c0_i32_0 : i32, i32
  }
  func.func @transform_6(%arg0: i32) -> (i32, i32, i32) {
    %c0_i32 = arith.constant 0 : i32
    %c0_i32_0 = arith.constant 0 : i32
    %c0_i32_1 = arith.constant 0 : i32
    %c0_i32_2 = arith.constant 0 : i32
    return %c0_i32, %c0_i32_0, %c0_i32_1 : i32, i32, i32
  }
  func.func @transform_7(%arg0: i32) -> (i32, i32) {
    %c0_i32 = arith.constant 0 : i32
    %c0_i32_0 = arith.constant 0 : i32
    %c0_i32_1 = arith.constant 0 : i32
    return %c0_i32, %c0_i32_0 : i32, i32
  }
  func.func @transform_8(%arg0: i32) -> (i32, i32) {
    %c0_i32 = arith.constant 0 : i32
    %c0_i32_0 = arith.constant 0 : i32
    %c0_i32_1 = arith.constant 0 : i32
    return %c0_i32, %c0_i32_0 : i32, i32
  }
  func.func @transform_9(%arg0: i32) -> (i32, i32) {
    %c0_i32 = arith.constant 0 : i32
    %c0_i32_0 = arith.constant 0 : i32
    %c0_i32_1 = arith.constant 0 : i32
    return %c0_i32, %c0_i32_0 : i32, i32
  }
  func.func @transform_10(%arg0: i32) -> (i32, i32) {
    %c0_i32 = arith.constant 0 : i32
    %c0_i32_0 = arith.constant 0 : i32
    %c0_i32_1 = arith.constant 0 : i32
    return %c0_i32, %c0_i32_0 : i32, i32
  }
}

</mosaic_0001>

<llo_original>
// kernel: tpu_custom_call.1
$region0: #{tpu_custom_call.1}
  #allocation0 [shape = 'u32[]', space=smem, size = 0x4, offset = 0x4, fixed_abs, tag = 'smem constant byte address 0x4 - core index']
  #allocation1 [shape = 'u32[72,128]{1,0:T(1,128)}', space=vmem, size = 0x9000, scoped, tag = 'internal scratch']
  %s0 = inlined_call_operand.vmem [shape: f32[16,16], index: 0, kind: input, shape index: {}]
  %s1 = inlined_call_operand.vmem [shape: f32[16,8], index: 1, kind: input, shape index: {}]
  %s2 = inlined_call_operand.vmem [shape: f32[6,32,32], index: 2, kind: input, shape index: {}]
  %s3 = inlined_call_operand.hbm [shape: f32[6,1,32], index: 3, kind: input, shape index: {}]
  %s4 = inlined_call_operand.vmem [shape: f32[8,16,1], index: 4, kind: input, shape index: {}]
  %s5 = inlined_call_operand.vmem [shape: f32[8,16], index: 5, kind: input, shape index: {}]
  %s6 = inlined_call_operand.vmem [shape: f32[2,32,8], index: 6, kind: input, shape index: {}]
  %s7 = inlined_call_operand.vmem [shape: f32[1,8], index: 7, kind: input, shape index: {}]
  %s8 = inlined_call_operand.hbm [shape: f32[8,128], index: 8, kind: input, shape index: {}]
  %s9 = inlined_call_operand.vmem [shape: f32[1,128], index: 9, kind: input, shape index: {}]
  %s10 = inlined_call_operand.hbm [shape: f32[8,128], index: 10, kind: output, shape index: {}]
  %s11 = sld [smem:[#allocation0]]
  $region58: #{tpu_custom_call.1} parent=0
    _
  %s13 = ssub.s32 1, %s11
  %s14 = scalar_select 0, %s13, %s11
  $region1: #{tpu_custom_call.1} parent=0
    #allocation2 [shape = 'u8[3072]{0}', space=vmem, size = 0xc00, scoped, tag = 'input window, operand 3, single buffered']
    #allocation3 [shape = 's32[1]{0}', space=sflag, size = 0x4, scoped, tag = 'scoped memory for tpu_custom_call.1']
    #allocation4 [shape = 's32[1]{0}', space=sflag, size = 0x4, scoped, tag = 'scoped memory for tpu_custom_call.1']
    #allocation5 [shape = 'u8[4096]{0}', space=vmem, size = 0x1000, scoped, tag = 'input window, operand 8, single buffered']
    #allocation6 [shape = 's32[1]{0}', space=sflag, size = 0x4, scoped, tag = 'scoped memory for tpu_custom_call.1']
    #allocation7 [shape = 'u8[4096]{0}', space=vmem, size = 0x1000, scoped, tag = 'output window, operand 0, single buffered']
    %15 = vsyncpa [#allocation3], 0
    %16 = vsyncpa [#allocation6], 0
    %17 = vsyncpa [#allocation4], 0
    // Predicated region
    $region2: #{tpu_custom_call.1} parent=1 // pred_check
      _
    $region3: #{tpu_custom_call.1} parent=1 // pred_check_branch
      %19 = sbr.rel (0) target = $region5
    $region4: #{tpu_custom_call.1} parent=1 // pred_region
      _
    $region5: #{tpu_custom_call.1} parent=1 // pred_fallthru
      _
    // Predicated region
    $region6: #{tpu_custom_call.1} parent=1 // pred_check
      _
    $region7: #{tpu_custom_call.1} parent=1 // pred_check_branch
      %21 = sbr.rel (0) target = $region9
    $region8: #{tpu_custom_call.1} parent=1 // pred_region
      _
    $region9: #{tpu_custom_call.1} parent=1 // pred_fallthru
      _
    // Predicated region
    $region10: #{tpu_custom_call.1} parent=1 // pred_check
      _
    $region11: #{tpu_custom_call.1} parent=1 // pred_check_branch
      %23 = sbr.rel (0) target = $region13
    $region12: #{tpu_custom_call.1} parent=1 // pred_region
      _
    $region13: #{tpu_custom_call.1} parent=1 // pred_fallthru
      _
    // Predicated region
    $region14: #{tpu_custom_call.1} parent=1 // pred_check
      _
    $region15: #{tpu_custom_call.1} parent=1 // pred_check_branch
      %25 = sbr.rel (0) target = $region17
    $region16: #{tpu_custom_call.1} parent=1 // pred_region
      %27 = vsyncadd [#allocation3], 0
      %s28 = sshll.u32 %s3, 4
      %s29 = int_to_ptr.hbm [resolvable:$true] %s28
      %s30 = sshll.u32 [#allocation2], 4
      %s31 = int_to_ptr.vmem [resolvable:$true] %s30
      %36 = dma.hbm_to_vmem [thread:$0]  %s29, 96, %s31, [#allocation3], 16, 16, 1
    $region17: #{tpu_custom_call.1} parent=1 // pred_fallthru
      _
    // Predicated region
    $region18: #{tpu_custom_call.1} parent=1 // pred_check
      _
    $region19: #{tpu_custom_call.1} parent=1 // pred_check_branch
      %38 = sbr.rel (0) target = $region21
    $region20: #{tpu_custom_call.1} parent=1 // pred_region
      _
    $region21: #{tpu_custom_call.1} parent=1 // pred_fallthru
      _
    // Predicated region
    $region22: #{tpu_custom_call.1} parent=1 // pred_check
      _
    $region23: #{tpu_custom_call.1} parent=1 // pred_check_branch
      %40 = sbr.rel (0) target = $region25
    $region24: #{tpu_custom_call.1} parent=1 // pred_region
      _
    $region25: #{tpu_custom_call.1} parent=1 // pred_fallthru
      _
    // Predicated region
    $region26: #{tpu_custom_call.1} parent=1 // pred_check
      _
    $region27: #{tpu_custom_call.1} parent=1 // pred_check_branch
      %42 = sbr.rel (0) target = $region29
    $region28: #{tpu_custom_call.1} parent=1 // pred_region
      _
    $region29: #{tpu_custom_call.1} parent=1 // pred_fallthru
      _
    // Predicated region
    $region30: #{tpu_custom_call.1} parent=1 // pred_check
      _
    $region31: #{tpu_custom_call.1} parent=1 // pred_check_branch
      %44 = sbr.rel (0) target = $region33
    $region32: #{tpu_custom_call.1} parent=1 // pred_region
      _
    $region33: #{tpu_custom_call.1} parent=1 // pred_fallthru
      _
    // Predicated region
    $region34: #{tpu_custom_call.1} parent=1 // pred_check
      _
    $region35: #{tpu_custom_call.1} parent=1 // pred_check_branch
      %46 = sbr.rel (0) target = $region37
    $region36: #{tpu_custom_call.1} parent=1 // pred_region
      %48 = vsyncadd [#allocation6], 0
      %s50 = sshll.u32 %s8, 4
      %s51 = int_to_ptr.hbm [resolvable:$true] %s50
      %s52 = sshll.u32 [#allocation5], 4
      %s53 = int_to_ptr.vmem [resolvable:$true] %s52
      %55 = dma.hbm_to_vmem [thread:$0]  %s51, 128, %s53, [#allocation6]
    $region37: #{tpu_custom_call.1} parent=1 // pred_fallthru
      _
    // Predicated region
    $region38: #{tpu_custom_call.1} parent=1 // pred_check
      _
    $region39: #{tpu_custom_call.1} parent=1 // pred_check_branch
      %57 = sbr.rel (0) target = $region41
    $region40: #{tpu_custom_call.1} parent=1 // pred_region
      _
    $region41: #{tpu_custom_call.1} parent=1 // pred_fallthru
      _
    // Predicated region
    $region42: #{tpu_custom_call.1} parent=1 // pred_check
      _
    $region43: #{tpu_custom_call.1} parent=1 // pred_check_branch
      %59 = sbr.rel (0) target = $region45
    $region44: #{tpu_custom_call.1} parent=1 // pred_region
      %61 = dma.done [#allocation3], 96
    $region45: #{tpu_custom_call.1} parent=1 // pred_fallthru
      _
    // Predicated region
    $region46: #{tpu_custom_call.1} parent=1 // pred_check
      _
    $region47: #{tpu_custom_call.1} parent=1 // pred_check_branch
      %63 = sbr.rel (0) target = $region49
    $region48: #{tpu_custom_call.1} parent=1 // pred_region
      %65 = dma.done [#allocation6], 128
    $region49: #{tpu_custom_call.1} parent=1 // pred_fallthru
      _
    %v66 = vld [vmem:[%s0] sm:$0xff]
    %v67 = vld [vmem:[%s0 + $0x8] sm:$0xff]
    %v68 = vld [vmem:[%s1] sm:$0xff]
    %v69 = vld [vmem:[%s1 + $0x8] sm:$0xff]
    %v70 = vld [vmem:[%s2] sm:$0xff]
    %v71 = vld [vmem:[#allocation2] sm:$0x1]
    %vm72 = vcmask 64512
    %v74 = vsel %vm72, %v68, 0
    %v77 = vsel %vm72, %v69, 0
    %79 = vmatpush.msra.mxu0 0.0
    %80 = vmatpush.msra.mxu0 0.0
    %81 = vmatpush.msra.mxu0 0.0
    %82 = vmatpush.msra.mxu0 0.0
    %83 = vmatpush.msra.mxu0 0.0
    %84 = vmatpush.msra.mxu0 0.0
    %85 = vmatpush.msra.mxu0 0.0
    %86 = vmatpush.msra.mxu0 0.0
    %87 = vmatpush.msra.mxu0 0.0
    %88 = vmatpush.msra.mxu0 0.0
    %89 = vmatpush.msra.mxu0 0.0
    %90 = vmatpush.msra.mxu0 0.0
    %91 = vmatpush.msra.mxu0 0.0
    %92 = vmatpush.msra.mxu0 0.0
    %93 = vmatpush.msra.mxu0 0.0
    %94 = vmatpush.msra.mxu0 %v70
    %95 = vmatmul.f32.gmra.mxu0 %v74
    %v96 = vpop.f32.mrf.mxu0
    %v97 = vadd.f32 0.0, %v96
    %98 = vmatmul.f32.gmra.mxu0 %v77
    %v99 = vpop.f32.mrf.mxu0
    %v100 = vadd.f32 0.0, %v99
    %101 = vdwg.mxu0
    %v103 = vperm.slane %v71, 0
    %vm105 = vcmask 130048
    %v107 = vsel %vm105, %v66, 0
    %v110 = vsel %vm105, %v67, 0
    %112 = vmatpush.msra.mxu0 0.0
    %113 = vmatpush.msra.mxu0 0.0
    %114 = vmatpush.msra.mxu0 0.0
    %115 = vmatpush.msra.mxu0 0.0
    %116 = vmatpush.msra.mxu0 0.0
    %117 = vmatpush.msra.mxu0 0.0
    %118 = vmatpush.msra.mxu0 0.0
    %119 = vmatpush.msra.mxu0 0.0
    %120 = vmatpush.msra.mxu0 0.0
    %121 = vmatpush.msra.mxu0 0.0
    %122 = vmatpush.msra.mxu0 0.0
    %123 = vmatpush.msra.mxu0 0.0
    %124 = vmatpush.msra.mxu0 0.0
    %125 = vmatpush.msra.mxu0 0.0
    %126 = vmatpush.msra.mxu0 %v100
    %127 = vmatpush.msra.mxu0 %v97
    %128 = vmatmul.f32.gmra.mxu0 %v107
    %v129 = vpop.f32.mrf.mxu0
    %v130 = vadd.f32 %v103, %v129
    %131 = vmatmul.f32.gmra.mxu0 %v110
    %v132 = vpop.f32.mrf.mxu0
    %v133 = vadd.f32 %v103, %v132
    %134 = vdwg.mxu0
    %v135 = vmax.f32 %v130, 0.0
    %v136 = vmax.f32 %v133, 0.0
    %s137 = scalar_lea.vmem %s2, 32
    %v138 = vld [vmem:[%s137] sm:$0xff]
    %v139 = vld [vmem:[%s137 + $0x8] sm:$0xff]
    %v140 = vld [vmem:[%s137 + $0x10] sm:$0xff]
    %v141 = vld [vmem:[%s137 + $0x18] sm:$0xff]
    %s142 = scalar_lea.vmem [#allocation2], 1
    %v143 = vld [vmem:[%s142] sm:$0x1]
    %vm144 = vcmask 261120
    %v146 = vsel %vm144, %v135, 0
    %v149 = vsel %vm144, %v136, 0
    %151 = vmatpush.msra.mxu0 0.0
    %152 = vmatpush.msra.mxu0 0.0
    %153 = vmatpush.msra.mxu0 0.0
    %154 = vmatpush.msra.mxu0 0.0
    %155 = vmatpush.msra.mxu0 0.0
    %156 = vmatpush.msra.mxu0 0.0
    %157 = vmatpush.msra.mxu0 0.0
    %158 = vmatpush.msra.mxu0 0.0
    %159 = vmatpush.msra.mxu0 0.0
    %160 = vmatpush.msra.mxu0 0.0
    %161 = vmatpush.msra.mxu0 0.0
    %162 = vmatpush.msra.mxu0 0.0
    %163 = vmatpush.msra.mxu0 %v141
    %164 = vmatpush.msra.mxu0 %v140
    %165 = vmatpush.msra.mxu0 %v139
    %166 = vmatpush.msra.mxu0 %v138
    %167 = vmatmul.f32.gmra.mxu0 %v146
    %v168 = vpop.f32.mrf.mxu0
    %v169 = vadd.f32 0.0, %v168
    %170 = vmatmul.f32.gmra.mxu0 %v149
    %v171 = vpop.f32.mrf.mxu0
    %v172 = vadd.f32 0.0, %v171
    %173 = vdwg.mxu0
    %v175 = vperm.slane %v143, 0
    %177 = vmatpush.msra.mxu0 0.0
    %178 = vmatpush.msra.mxu0 0.0
    %179 = vmatpush.msra.mxu0 0.0
    %180 = vmatpush.msra.mxu0 0.0
    %181 = vmatpush.msra.mxu0 0.0
    %182 = vmatpush.msra.mxu0 0.0
    %183 = vmatpush.msra.mxu0 0.0
    %184 = vmatpush.msra.mxu0 0.0
    %185 = vmatpush.msra.mxu0 0.0
    %186 = vmatpush.msra.mxu0 0.0
    %187 = vmatpush.msra.mxu0 0.0
    %188 = vmatpush.msra.mxu0 0.0
    %189 = vmatpush.msra.mxu0 0.0
    %190 = vmatpush.msra.mxu0 0.0
    %191 = vmatpush.msra.mxu0 %v172
    %192 = vmatpush.msra.mxu0 %v169
    %193 = vmatmul.f32.gmra.mxu0 %v107
    %v194 = vpop.f32.mrf.mxu0
    %v195 = vadd.f32 %v175, %v194
    %196 = vmatmul.f32.gmra.mxu0 %v110
    %v197 = vpop.f32.mrf.mxu0
    %v198 = vadd.f32 %v175, %v197
    %199 = vdwg.mxu0
    %v200 = vmax.f32 %v195, 0.0
    %v201 = vmax.f32 %v198, 0.0
    %s202 = scalar_lea.vmem %s2, 64
    %v203 = vld [vmem:[%s202] sm:$0xff]
    %v204 = vld [vmem:[%s202 + $0x8] sm:$0xff]
    %v205 = vld [vmem:[%s202 + $0x10] sm:$0xff]
    %v206 = vld [vmem:[%s202 + $0x18] sm:$0xff]
    %s207 = scalar_lea.vmem [#allocation2], 2
    %v208 = vld [vmem:[%s207] sm:$0x1]
    %v210 = vsel %vm144, %v200, 0
    %v213 = vsel %vm144, %v201, 0
    %215 = vmatpush.msra.mxu0 0.0
    %216 = vmatpush.msra.mxu0 0.0
    %217 = vmatpush.msra.mxu0 0.0
    %218 = vmatpush.msra.mxu0 0.0
    %219 = vmatpush.msra.mxu0 0.0
    %220 = vmatpush.msra.mxu0 0.0
    %221 = vmatpush.msra.mxu0 0.0
    %222 = vmatpush.msra.mxu0 0.0
    %223 = vmatpush.msra.mxu0 0.0
    %224 = vmatpush.msra.mxu0 0.0
    %225 = vmatpush.msra.mxu0 0.0
    %226 = vmatpush.msra.mxu0 0.0
    %227 = vmatpush.msra.mxu0 %v206
    %228 = vmatpush.msra.mxu0 %v205
    %229 = vmatpush.msra.mxu0 %v204
    %230 = vmatpush.msra.mxu0 %v203
    %231 = vmatmul.f32.gmra.mxu0 %v210
    %v232 = vpop.f32.mrf.mxu0
    %v233 = vadd.f32 0.0, %v232
    %234 = vmatmul.f32.gmra.mxu0 %v213
    %v235 = vpop.f32.mrf.mxu0
    %v236 = vadd.f32 0.0, %v235
    %237 = vdwg.mxu0
    %v239 = vperm.slane %v208, 0
    %241 = vmatpush.msra.mxu0 0.0
    %242 = vmatpush.msra.mxu0 0.0
    %243 = vmatpush.msra.mxu0 0.0
    %244 = vmatpush.msra.mxu0 0.0
    %245 = vmatpush.msra.mxu0 0.0
    %246 = vmatpush.msra.mxu0 0.0
    %247 = vmatpush.msra.mxu0 0.0
    %248 = vmatpush.msra.mxu0 0.0
    %249 = vmatpush.msra.mxu0 0.0
    %250 = vmatpush.msra.mxu0 0.0
    %251 = vmatpush.msra.mxu0 0.0
    %252 = vmatpush.msra.mxu0 0.0
    %253 = vmatpush.msra.mxu0 0.0
    %254 = vmatpush.msra.mxu0 0.0
    %255 = vmatpush.msra.mxu0 %v236
    %256 = vmatpush.msra.mxu0 %v233
    %257 = vmatmul.f32.gmra.mxu0 %v107
    %v258 = vpop.f32.mrf.mxu0
    %v259 = vadd.f32 %v239, %v258
    %260 = vmatmul.f32.gmra.mxu0 %v110
    %v261 = vpop.f32.mrf.mxu0
    %v262 = vadd.f32 %v239, %v261
    %263 = vdwg.mxu0
    %v264 = vmax.f32 %v259, 0.0
    %v265 = vmax.f32 %v262, 0.0
    %s266 = scalar_lea.vmem %s2, 96
    %v267 = vld [vmem:[%s266] sm:$0xff]
    %v268 = vld [vmem:[%s266 + $0x8] sm:$0xff]
    %v269 = vld [vmem:[%s266 + $0x10] sm:$0xff]
    %v270 = vld [vmem:[%s266 + $0x18] sm:$0xff]
    %s271 = scalar_lea.vmem [#allocation2], 3
    %v272 = vld [vmem:[%s271] sm:$0x1]
    %v274 = vsel %vm144, %v264, 0
    %v277 = vsel %vm144, %v265, 0
    %279 = vmatpush.msra.mxu0 0.0
    %280 = vmatpush.msra.mxu0 0.0
    %281 = vmatpush.msra.mxu0 0.0
    %282 = vmatpush.msra.mxu0 0.0
    %283 = vmatpush.msra.mxu0 0.0
    %284 = vmatpush.msra.mxu0 0.0
    %285 = vmatpush.msra.mxu0 0.0
    %286 = vmatpush.msra.mxu0 0.0
    %287 = vmatpush.msra.mxu0 0.0
    %288 = vmatpush.msra.mxu0 0.0
    %289 = vmatpush.msra.mxu0 0.0
    %290 = vmatpush.msra.mxu0 0.0
    %291 = vmatpush.msra.mxu0 %v270
    %292 = vmatpush.msra.mxu0 %v269
    %293 = vmatpush.msra.mxu0 %v268
    %294 = vmatpush.msra.mxu0 %v267
    %295 = vmatmul.f32.gmra.mxu0 %v274
    %v296 = vpop.f32.mrf.mxu0
    %v297 = vadd.f32 0.0, %v296
    %298 = vmatmul.f32.gmra.mxu0 %v277
    %v299 = vpop.f32.mrf.mxu0
    %v300 = vadd.f32 0.0, %v299
    %301 = vdwg.mxu0
    %v303 = vperm.slane %v272, 0
    %305 = vmatpush.msra.mxu0 0.0
    %306 = vmatpush.msra.mxu0 0.0
    %307 = vmatpush.msra.mxu0 0.0
    %308 = vmatpush.msra.mxu0 0.0
    %309 = vmatpush.msra.mxu0 0.0
    %310 = vmatpush.msra.mxu0 0.0
    %311 = vmatpush.msra.mxu0 0.0
    %312 = vmatpush.msra.mxu0 0.0
    %313 = vmatpush.msra.mxu0 0.0
    %314 = vmatpush.msra.mxu0 0.0
    %315 = vmatpush.msra.mxu0 0.0
    %316 = vmatpush.msra.mxu0 0.0
    %317 = vmatpush.msra.mxu0 0.0
    %318 = vmatpush.msra.mxu0 0.0
    %319 = vmatpush.msra.mxu0 %v300
    %320 = vmatpush.msra.mxu0 %v297
    %321 = vmatmul.f32.gmra.mxu0 %v107
    %v322 = vpop.f32.mrf.mxu0
    %v323 = vadd.f32 %v303, %v322
    %324 = vmatmul.f32.gmra.mxu0 %v110
    %v325 = vpop.f32.mrf.mxu0
    %v326 = vadd.f32 %v303, %v325
    %327 = vdwg.mxu0
    %v328 = vmax.f32 %v323, 0.0
    %v329 = vmax.f32 %v326, 0.0
    %s330 = scalar_lea.vmem %s2, 128
    %v331 = vld [vmem:[%s330] sm:$0xff]
    %v332 = vld [vmem:[%s330 + $0x8] sm:$0xff]
    %v333 = vld [vmem:[%s330 + $0x10] sm:$0xff]
    %v334 = vld [vmem:[%s330 + $0x18] sm:$0xff]
    %s335 = scalar_lea.vmem [#allocation2], 4
    %v336 = vld [vmem:[%s335] sm:$0x1]
    %v338 = vsel %vm144, %v328, 0
    %v341 = vsel %vm144, %v329, 0
    %343 = vmatpush.msra.mxu0 0.0
    %344 = vmatpush.msra.mxu0 0.0
    %345 = vmatpush.msra.mxu0 0.0
    %346 = vmatpush.msra.mxu0 0.0
    %347 = vmatpush.msra.mxu0 0.0
    %348 = vmatpush.msra.mxu0 0.0
    %349 = vmatpush.msra.mxu0 0.0
    %350 = vmatpush.msra.mxu0 0.0
    %351 = vmatpush.msra.mxu0 0.0
    %352 = vmatpush.msra.mxu0 0.0
    %353 = vmatpush.msra.mxu0 0.0
    %354 = vmatpush.msra.mxu0 0.0
    %355 = vmatpush.msra.mxu0 %v334
    %356 = vmatpush.msra.mxu0 %v333
    %357 = vmatpush.msra.mxu0 %v332
    %358 = vmatpush.msra.mxu0 %v331
    %359 = vmatmul.f32.gmra.mxu0 %v338
    %v360 = vpop.f32.mrf.mxu0
    %v361 = vadd.f32 0.0, %v360
    %362 = vmatmul.f32.gmra.mxu0 %v341
    %v363 = vpop.f32.mrf.mxu0
    %v364 = vadd.f32 0.0, %v363
    %365 = vdwg.mxu0
    %v367 = vperm.slane %v336, 0
    %369 = vmatpush.msra.mxu0 0.0
    %370 = vmatpush.msra.mxu0 0.0
    %371 = vmatpush.msra.mxu0 0.0
    %372 = vmatpush.msra.mxu0 0.0
    %373 = vmatpush.msra.mxu0 0.0
    %374 = vmatpush.msra.mxu0 0.0
    %375 = vmatpush.msra.mxu0 0.0
    %376 = vmatpush.msra.mxu0 0.0
    %377 = vmatpush.msra.mxu0 0.0
    %378 = vmatpush.msra.mxu0 0.0
    %379 = vmatpush.msra.mxu0 0.0
    %380 = vmatpush.msra.mxu0 0.0
    %381 = vmatpush.msra.mxu0 0.0
    %382 = vmatpush.msra.mxu0 0.0
    %383 = vmatpush.msra.mxu0 %v364
    %384 = vmatpush.msra.mxu0 %v361
    %385 = vmatmul.f32.gmra.mxu0 %v107
    %v386 = vpop.f32.mrf.mxu0
    %v387 = vadd.f32 %v367, %v386
    %388 = vmatmul.f32.gmra.mxu0 %v110
    %v389 = vpop.f32.mrf.mxu0
    %v390 = vadd.f32 %v367, %v389
    %391 = vdwg.mxu0
    %v392 = vmax.f32 %v387, 0.0
    %v393 = vmax.f32 %v390, 0.0
    %s394 = scalar_lea.vmem %s2, 160
    %v395 = vld [vmem:[%s394] sm:$0xff]
    %v396 = vld [vmem:[%s394 + $0x8] sm:$0xff]
    %v397 = vld [vmem:[%s394 + $0x10] sm:$0xff]
    %v398 = vld [vmem:[%s394 + $0x18] sm:$0xff]
    %s399 = scalar_lea.vmem [#allocation2], 5
    %v400 = vld [vmem:[%s399] sm:$0x1]
    %v402 = vsel %vm144, %v392, 0
    %v405 = vsel %vm144, %v393, 0
    %407 = vmatpush.msra.mxu0 0.0
    %408 = vmatpush.msra.mxu0 0.0
    %409 = vmatpush.msra.mxu0 0.0
    %410 = vmatpush.msra.mxu0 0.0
    %411 = vmatpush.msra.mxu0 0.0
    %412 = vmatpush.msra.mxu0 0.0
    %413 = vmatpush.msra.mxu0 0.0
    %414 = vmatpush.msra.mxu0 0.0
    %415 = vmatpush.msra.mxu0 0.0
    %416 = vmatpush.msra.mxu0 0.0
    %417 = vmatpush.msra.mxu0 0.0
    %418 = vmatpush.msra.mxu0 0.0
    %419 = vmatpush.msra.mxu0 %v398
    %420 = vmatpush.msra.mxu0 %v397
    %421 = vmatpush.msra.mxu0 %v396
    %422 = vmatpush.msra.mxu0 %v395
    %423 = vmatmul.f32.gmra.mxu0 %v402
    %v424 = vpop.f32.mrf.mxu0
    %v425 = vadd.f32 0.0, %v424
    %426 = vmatmul.f32.gmra.mxu0 %v405
    %v427 = vpop.f32.mrf.mxu0
    %v428 = vadd.f32 0.0, %v427
    %429 = vdwg.mxu0
    %v431 = vperm.slane %v400, 0
    %433 = vmatpush.msra.mxu0 0.0
    %434 = vmatpush.msra.mxu0 0.0
    %435 = vmatpush.msra.mxu0 0.0
    %436 = vmatpush.msra.mxu0 0.0
    %437 = vmatpush.msra.mxu0 0.0
    %438 = vmatpush.msra.mxu0 0.0
    %439 = vmatpush.msra.mxu0 0.0
    %440 = vmatpush.msra.mxu0 0.0
    %441 = vmatpush.msra.mxu0 0.0
    %442 = vmatpush.msra.mxu0 0.0
    %443 = vmatpush.msra.mxu0 0.0
    %444 = vmatpush.msra.mxu0 0.0
    %445 = vmatpush.msra.mxu0 0.0
    %446 = vmatpush.msra.mxu0 0.0
    %447 = vmatpush.msra.mxu0 %v428
    %448 = vmatpush.msra.mxu0 %v425
    %449 = vmatmul.f32.gmra.mxu0 %v107
    %v450 = vpop.f32.mrf.mxu0
    %v451 = vadd.f32 %v431, %v450
    %452 = vmatmul.f32.gmra.mxu0 %v110
    %v453 = vpop.f32.mrf.mxu0
    %v454 = vadd.f32 %v431, %v453
    %455 = vdwg.mxu0
    %v456 = vld [vmem:[%s5] sm:$0xff]
    %v458 = vsel %vm105, %v456, 0
    %460 = vmatpush.msra.mxu0 0.0
    %461 = vmatpush.msra.mxu0 0.0
    %462 = vmatpush.msra.mxu0 0.0
    %463 = vmatpush.msra.mxu0 0.0
    %464 = vmatpush.msra.mxu0 0.0
    %465 = vmatpush.msra.mxu0 0.0
    %466 = vmatpush.msra.mxu0 0.0
    %467 = vmatpush.msra.mxu0 0.0
    %468 = vmatpush.msra.mxu0 0.0
    %469 = vmatpush.msra.mxu0 0.0
    %470 = vmatpush.msra.mxu0 0.0
    %471 = vmatpush.msra.mxu0 0.0
    %472 = vmatpush.msra.mxu0 0.0
    %473 = vmatpush.msra.mxu0 0.0
    %474 = vmatpush.msra.mxu0 %v454
    %475 = vmatpush.msra.mxu0 %v451
    %476 = vmatmul.f32.gmra.mxu0 %v458
    %v477 = vpop.f32.mrf.mxu0
    %v478 = vadd.f32 0.0, %v477
    %479 = vdwg.mxu0
    %v480 = vld [vmem:[%s4] sm:$0xff]
    %v481 = vld [vmem:[%s4 + $0x8] sm:$0xff]
    %v482 = vld [vmem:[%s4 + $0x10] sm:$0xff]
    %v483 = vld [vmem:[%s4 + $0x18] sm:$0xff]
    %v484 = vld [vmem:[%s4 + $0x20] sm:$0xff]
    %v485 = vld [vmem:[%s4 + $0x28] sm:$0xff]
    %v486 = vld [vmem:[%s4 + $0x30] sm:$0xff]
    %v487 = vld [vmem:[%s4 + $0x38] sm:$0xff]
    %v488 = vld [vmem:[%s4 + $0x40] sm:$0xff]
    %v489 = vld [vmem:[%s4 + $0x48] sm:$0xff]
    %v490 = vld [vmem:[%s4 + $0x50] sm:$0xff]
    %v491 = vld [vmem:[%s4 + $0x58] sm:$0xff]
    %v492 = vld [vmem:[%s4 + $0x60] sm:$0xff]
    %v493 = vld [vmem:[%s4 + $0x68] sm:$0xff]
    %v494 = vld [vmem:[%s4 + $0x70] sm:$0xff]
    %v495 = vld [vmem:[%s4 + $0x78] sm:$0xff]
    %497 = vset.pattern.permute.xlu0 0
    %498 = vperm.xlu0 %497, %v480
    %v499 = vpop.permute.xlu0 %498
    %502 = vset.pattern.permute.xlu0 0
    %503 = vperm.xlu0 %502, %v481
    %v504 = vpop.permute.xlu0 %503
    %507 = vset.pattern.permute.xlu0 0
    %508 = vperm.xlu0 %507, %v482
    %v509 = vpop.permute.xlu0 %508
    %512 = vset.pattern.permute.xlu0 0
    %513 = vperm.xlu0 %512, %v483
    %v514 = vpop.permute.xlu0 %513
    %517 = vset.pattern.permute.xlu0 0
    %518 = vperm.xlu0 %517, %v484
    %v519 = vpop.permute.xlu0 %518
    %522 = vset.pattern.permute.xlu0 0
    %523 = vperm.xlu0 %522, %v485
    %v524 = vpop.permute.xlu0 %523
    %527 = vset.pattern.permute.xlu0 0
    %528 = vperm.xlu0 %527, %v486
    %v529 = vpop.permute.xlu0 %528
    %532 = vset.pattern.permute.xlu0 0
    %533 = vperm.xlu0 %532, %v487
    %v534 = vpop.permute.xlu0 %533
    %537 = vset.pattern.permute.xlu0 0
    %538 = vperm.xlu0 %537, %v488
    %v539 = vpop.permute.xlu0 %538
    %542 = vset.pattern.permute.xlu0 0
    %543 = vperm.xlu0 %542, %v489
    %v544 = vpop.permute.xlu0 %543
    %547 = vset.pattern.permute.xlu0 0
    %548 = vperm.xlu0 %547, %v490
    %v549 = vpop.permute.xlu0 %548
    %552 = vset.pattern.permute.xlu0 0
    %553 = vperm.xlu0 %552, %v491
    %v554 = vpop.permute.xlu0 %553
    %557 = vset.pattern.permute.xlu0 0
    %558 = vperm.xlu0 %557, %v492
    %v559 = vpop.permute.xlu0 %558
    %562 = vset.pattern.permute.xlu0 0
    %563 = vperm.xlu0 %562, %v493
    %v564 = vpop.permute.xlu0 %563
    %567 = vset.pattern.permute.xlu0 0
    %568 = vperm.xlu0 %567, %v494
    %v569 = vpop.permute.xlu0 %568
    %572 = vset.pattern.permute.xlu0 0
    %573 = vperm.xlu0 %572, %v495
    %v574 = vpop.permute.xlu0 %573
    %v576 = vadd.f32 %v499, %v451
    %v577 = vadd.f32 %v504, %v454
    %v578 = vadd.f32 %v509, %v451
    %v579 = vadd.f32 %v514, %v454
    %v580 = vadd.f32 %v519, %v451
    %v581 = vadd.f32 %v524, %v454
    %v582 = vadd.f32 %v529, %v451
    %v583 = vadd.f32 %v534, %v454
    %v584 = vadd.f32 %v539, %v451
    %v585 = vadd.f32 %v544, %v454
    %v586 = vadd.f32 %v549, %v451
    %v587 = vadd.f32 %v554, %v454
    %v588 = vadd.f32 %v559, %v451
    %v589 = vadd.f32 %v564, %v454
    %v590 = vadd.f32 %v569, %v451
    %v591 = vadd.f32 %v574, %v454
    %v592 = vsel %vm144, %v576, -inf
    %v593 = vsel %vm144, %v577, -inf
    %v594 = vmax.f32 %v592, %v593
    %v595 = vrot.slane %v594, 4
    %v596 = vmax.f32 %v594, %v595
    %v597 = vrot.slane %v596, 2
    %v598 = vmax.f32 %v596, %v597
    %v599 = vrot.slane %v598, 1
    %v600 = vmax.f32 %v598, %v599
    %v601 = vsel %vm144, %v578, -inf
    %v602 = vsel %vm144, %v579, -inf
    %v603 = vmax.f32 %v601, %v602
    %v604 = vrot.slane %v603, 4
    %v605 = vmax.f32 %v603, %v604
    %v606 = vrot.slane %v605, 2
    %v607 = vmax.f32 %v605, %v606
    %v608 = vrot.slane %v607, 1
    %v609 = vmax.f32 %v607, %v608
    %v610 = vsel %vm144, %v580, -inf
    %v611 = vsel %vm144, %v581, -inf
    %v612 = vmax.f32 %v610, %v611
    %v613 = vrot.slane %v612, 4
    %v614 = vmax.f32 %v612, %v613
    %v615 = vrot.slane %v614, 2
    %v616 = vmax.f32 %v614, %v615
    %v617 = vrot.slane %v616, 1
    %v618 = vmax.f32 %v616, %v617
    %v619 = vsel %vm144, %v582, -inf
    %v620 = vsel %vm144, %v583, -inf
    %v621 = vmax.f32 %v619, %v620
    %v622 = vrot.slane %v621, 4
    %v623 = vmax.f32 %v621, %v622
    %v624 = vrot.slane %v623, 2
    %v625 = vmax.f32 %v623, %v624
    %v626 = vrot.slane %v625, 1
    %v627 = vmax.f32 %v625, %v626
    %v628 = vsel %vm144, %v584, -inf
    %v629 = vsel %vm144, %v585, -inf
    %v630 = vmax.f32 %v628, %v629
    %v631 = vrot.slane %v630, 4
    %v632 = vmax.f32 %v630, %v631
    %v633 = vrot.slane %v632, 2
    %v634 = vmax.f32 %v632, %v633
    %v635 = vrot.slane %v634, 1
    %v636 = vmax.f32 %v634, %v635
    %v637 = vsel %vm144, %v586, -inf
    %v638 = vsel %vm144, %v587, -inf
    %v639 = vmax.f32 %v637, %v638
    %v640 = vrot.slane %v639, 4
    %v641 = vmax.f32 %v639, %v640
    %v642 = vrot.slane %v641, 2
    %v643 = vmax.f32 %v641, %v642
    %v644 = vrot.slane %v643, 1
    %v645 = vmax.f32 %v643, %v644
    %v646 = vsel %vm144, %v588, -inf
    %v647 = vsel %vm144, %v589, -inf
    %v648 = vmax.f32 %v646, %v647
    %v649 = vrot.slane %v648, 4
    %v650 = vmax.f32 %v648, %v649
    %v651 = vrot.slane %v650, 2
    %v652 = vmax.f32 %v650, %v651
    %v653 = vrot.slane %v652, 1
    %v654 = vmax.f32 %v652, %v653
    %v655 = vsel %vm144, %v590, -inf
    %v656 = vsel %vm144, %v591, -inf
    %v657 = vmax.f32 %v655, %v656
    %v658 = vrot.slane %v657, 4
    %v659 = vmax.f32 %v657, %v658
    %v660 = vrot.slane %v659, 2
    %v661 = vmax.f32 %v659, %v660
    %v662 = vrot.slane %v661, 1
    %v663 = vmax.f32 %v661, %v662
    %v664 = vmax.f32 %v600, 0.0
    %v665 = vmax.f32 %v609, 0.0
    %v666 = vmax.f32 %v618, 0.0
    %v667 = vmax.f32 %v627, 0.0
    %v668 = vmax.f32 %v636, 0.0
    %v669 = vmax.f32 %v645, 0.0
    %v670 = vmax.f32 %v654, 0.0
    %v671 = vmax.f32 %v663, 0.0
    %v672 = vmax.f32 %v478, 0.0
    %v673 = vld [vmem:[%s6] sm:$0xff]
    %v674 = vld [vmem:[%s6 + $0x8] sm:$0xff]
    %v675 = vld [vmem:[%s6 + $0x10] sm:$0xff]
    %v676 = vld [vmem:[%s6 + $0x18] sm:$0xff]
    %s677 = scalar_lea.vmem %s6, 32
    %v678 = vld [vmem:[%s677] sm:$0xff]
    %v679 = vld [vmem:[%s677 + $0x8] sm:$0xff]
    %v680 = vld [vmem:[%s677 + $0x10] sm:$0xff]
    %v681 = vld [vmem:[%s677 + $0x18] sm:$0xff]
    %v683 = vsel %vm144, %v672, 0
    %685 = vmatpush.msra.mxu0 0.0
    %686 = vmatpush.msra.mxu0 0.0
    %687 = vmatpush.msra.mxu0 0.0
    %688 = vmatpush.msra.mxu0 0.0
    %689 = vmatpush.msra.mxu0 0.0
    %690 = vmatpush.msra.mxu0 0.0
    %691 = vmatpush.msra.mxu0 0.0
    %692 = vmatpush.msra.mxu0 0.0
    %693 = vmatpush.msra.mxu0 0.0
    %694 = vmatpush.msra.mxu0 0.0
    %695 = vmatpush.msra.mxu0 0.0
    %696 = vmatpush.msra.mxu0 0.0
    %697 = vmatpush.msra.mxu0 %v681
    %698 = vmatpush.msra.mxu0 %v680
    %699 = vmatpush.msra.mxu0 %v679
    %700 = vmatpush.msra.mxu0 %v678
    %701 = vmatmul.f32.gmra.mxu0 %v683
    %v702 = vpop.f32.mrf.mxu0
    %v703 = vadd.f32 0.0, %v702
    %704 = vdwg.mxu0
    %vm713 = vcmask 1041409
    %v714 = vsel %vm713, %v665, %v664
    %vm715 = vcmask 1042434
    %v716 = vsel %vm715, %v666, %v714
    %vm717 = vcmask 1043459
    %v718 = vsel %vm717, %v667, %v716
    %vm719 = vcmask 1044484
    %v720 = vsel %vm719, %v668, %v718
    %vm721 = vcmask 1045509
    %v722 = vsel %vm721, %v669, %v720
    %vm723 = vcmask 1046534
    %v724 = vsel %vm723, %v670, %v722
    %vm725 = vcmask 1047559
    %v726 = vsel %vm725, %v671, %v724
    %v727 = vsel %vm144, %v726, 0
    %729 = vmatpush.msra.mxu0 0.0
    %730 = vmatpush.msra.mxu0 0.0
    %731 = vmatpush.msra.mxu0 0.0
    %732 = vmatpush.msra.mxu0 0.0
    %733 = vmatpush.msra.mxu0 0.0
    %734 = vmatpush.msra.mxu0 0.0
    %735 = vmatpush.msra.mxu0 0.0
    %736 = vmatpush.msra.mxu0 0.0
    %737 = vmatpush.msra.mxu0 0.0
    %738 = vmatpush.msra.mxu0 0.0
    %739 = vmatpush.msra.mxu0 0.0
    %740 = vmatpush.msra.mxu0 0.0
    %741 = vmatpush.msra.mxu0 %v676
    %742 = vmatpush.msra.mxu0 %v675
    %743 = vmatpush.msra.mxu0 %v674
    %744 = vmatpush.msra.mxu0 %v673
    %745 = vmatmul.f32.gmra.mxu0 %v727
    %v746 = vpop.f32.mrf.mxu0
    %v747 = vadd.f32 %v703, %v746
    %748 = vdwg.mxu0
    %v749 = vld [vmem:[%s7] sm:$0x1]
    %v751 = vperm.slane %v749, 0
    %v753 = vadd.f32 %v747, %v751
    %v754 = vld [vmem:[#allocation5] sm:$0xff]
    %v755 = vld [vmem:[%s9] sm:$0x1]
    %v757 = vperm.slane %v755, 0
    %v760 = vsel %vm72, %v753, 0
    %762 = vmatpush.msra.mxu0 0.0
    %763 = vmatpush.msra.mxu0 0.0
    %764 = vmatpush.msra.mxu0 0.0
    %765 = vmatpush.msra.mxu0 0.0
    %766 = vmatpush.msra.mxu0 0.0
    %767 = vmatpush.msra.mxu0 0.0
    %768 = vmatpush.msra.mxu0 0.0
    %769 = vmatpush.msra.mxu0 0.0
    %770 = vmatpush.msra.mxu0 0.0
    %771 = vmatpush.msra.mxu0 0.0
    %772 = vmatpush.msra.mxu0 0.0
    %773 = vmatpush.msra.mxu0 0.0
    %774 = vmatpush.msra.mxu0 0.0
    %775 = vmatpush.msra.mxu0 0.0
    %776 = vmatpush.msra.mxu0 0.0
    %777 = vmatpush.msra.mxu0 %v754
    %778 = vmatmul.f32.gmra.mxu0 %v760
    %v779 = vpop.f32.mrf.mxu0
    %v780 = vadd.f32 %v757, %v779
    %781 = vdwg.mxu0
    %782 = vst [vmem:[#allocation7] sm:$0xff] %v780
    // Predicated region
    $region50: #{tpu_custom_call.1} parent=1 // pred_check
      _
    $region51: #{tpu_custom_call.1} parent=1 // pred_check_branch
      %784 = sbr.rel (0) target = $region53
    $region52: #{tpu_custom_call.1} parent=1 // pred_region
      %786 = vsyncadd [#allocation4], 0
      %s788 = sshll.u32 [#allocation7], 4
      %s789 = int_to_ptr.vmem [resolvable:$true] %s788
      %s790 = sshll.u32 %s10, 4
      %s791 = int_to_ptr.hbm [resolvable:$true] %s790
      %793 = dma.vmem_to_hbm [thread:$0]  %s789, 128, %s791, [#allocation4]
    $region53: #{tpu_custom_call.1} parent=1 // pred_fallthru
      _
    // Predicated region
    $region54: #{tpu_custom_call.1} parent=1 // pred_check
      _
    $region55: #{tpu_custom_call.1} parent=1 // pred_check_branch
      %795 = sbr.rel (0) target = $region57
    $region56: #{tpu_custom_call.1} parent=1 // pred_region
      %797 = dma.done [#allocation4], 128
    $region57: #{tpu_custom_call.1} parent=1 // pred_fallthru
      _
    %798 = vsyncpa [#allocation3], 1
    %799 = vsyncpa [#allocation6], 1
    %800 = vsyncpa [#allocation4], 1

</llo_original>
